<compile_context>
chip_gen: v7x
topology: tpu7x:2x2x1
jax: 0.10.0
libtpu: 0.0.40
codegen_flags: <defaults>
</compile_context>

<pallas_src>
import functools

import jax
import jax.numpy as jnp
from jax.experimental import pallas as pl
from jax.experimental.pallas import tpu as pltpu


def _round_up(a, b):
    return (a + b - 1) // b * b


def _sublane_min(dtype):
    return 8 if jnp.dtype(dtype).itemsize >= 4 else 16


def _tpu_defaults():
    """Generation-aware VMEM capacity and preferred (tm, tk_ff) tiles."""
    vmem_cap = None
    try:
        vmem_cap = int(getattr(pltpu.get_tpu_info(), "vmem_capacity_bytes"))
    except Exception:
        vmem_cap = None
    kind = ""
    try:
        kind = jax.devices()[0].device_kind.lower()
    except Exception:
        kind = ""
    if vmem_cap is None:
        vmem_cap = (64 << 20) if "v7" in kind else (128 << 20)

    if "v7" in kind:
        tm_pref, tk_pref = 512, 256     # 64 MiB VMEM: moderate tm, small tk_ff
    elif "v6" in kind:
        tm_pref, tk_pref = 1024, 512    # move past the ~700 flop/byte ridge
    elif "v5" in kind:
        tm_pref, tk_pref = 512, 1024    # near ridge already; spend VMEM on tk_ff
    else:
        tm_pref, tk_pref = (512, 256) if vmem_cap <= (64 << 20) else (768, 512)
    return tm_pref, tk_pref, vmem_cap


def _choose_tk_ff(d_ff, tk_pref):
    """Largest 128-multiple <= tk_pref dividing the 128-aligned d_ff."""
    d_ff128 = _round_up(max(d_ff, 1), 128)
    tk_pref = max(128, (int(tk_pref) // 128) * 128)
    cap = min(tk_pref, d_ff128)
    for tk in range(cap, 127, -128):
        if d_ff128 % tk == 0:
            return tk
    return 128


def _vmem_estimate(tm, tk_ff, d_model, x_item, w_item, out_item, use_acc):
    blocks = (2 * tm * d_model * x_item              # x tile (double-buffered)
              + 2 * d_model * (2 * tk_ff) * w_item   # fused [W1^T | W3^T] slab
              + 2 * tk_ff * d_model * w_item         # W2^T slab
              + 2 * tm * d_model * out_item)         # output tile
    acc = tm * d_model * 4 if use_acc else 0
    # In-kernel intermediates: f32 h (tm, 2*tk_ff), gate, operand copies.
    inter = 3 * tm * (2 * tk_ff) * 4
    return blocks + acc + inter + (4 << 20)


def _swiglu_kernel_acc(x_ref, w13_ref, w2t_ref, o_ref, acc_ref):
    # Variant with an f32 VMEM accumulator (used when output dtype != f32).
    k = pl.program_id(1)

    @pl.when(k == 0)
    def _():
        acc_ref[...] = jnp.zeros_like(acc_ref)

    x = x_ref[...]
    # Fused W1/W3 projection: one wide MXU matmul, f32 accumulation.
    h = jnp.dot(x, w13_ref[...], preferred_element_type=jnp.float32)
    tk = h.shape[1] // 2                      # tk is a multiple of 128
    h1 = h[:, :tk]
    h3 = h[:, tk:]
    g = h1 * jax.nn.sigmoid(h1) * h3          # SiLU(h1) * h3

    acc_ref[...] += jnp.dot(g.astype(w2t_ref.dtype), w2t_ref[...],
                            preferred_element_type=jnp.float32)

    @pl.when(k == pl.num_programs(1) - 1)
    def _():
        o_ref[...] = acc_ref[...].astype(o_ref.dtype)


def _swiglu_kernel_inplace(x_ref, w13_ref, w2t_ref, o_ref):
    # f32 output: accumulate directly into the resident output block (its
    # block index is constant across the d_ff grid axis), no scratch needed.
    k = pl.program_id(1)

    @pl.when(k == 0)
    def _():
        o_ref[...] = jnp.zeros_like(o_ref)

    x = x_ref[...]
    h = jnp.dot(x, w13_ref[...], preferred_element_type=jnp.float32)
    tk = h.shape[1] // 2
    h1 = h[:, :tk]
    h3 = h[:, tk:]
    g = h1 * jax.nn.sigmoid(h1) * h3

    o_ref[...] += jnp.dot(g.astype(w2t_ref.dtype), w2t_ref[...],
                          preferred_element_type=jnp.float32)


def swiglu_forward(x, w13t, w2t, *, tk_ff, tm=None):
    """x: (batch, seq, d_model).
    w13t: (d_model, 2*d_ff_pad) block-interleaved [W1^T | W3^T] per tk_ff tile.
    w2t : (d_ff_pad, d_model).  (d_ff_pad is d_ff zero-padded to tk_ff.)
    """
    batch, seq, d_model = x.shape
    d_ff_pad = w2t.shape[0]
    assert w13t.shape == (d_model, 2 * d_ff_pad)
    assert tk_ff % 128 == 0 and d_ff_pad % tk_ff == 0

    tm_pref, _, vmem_cap = _tpu_defaults()
    if tm is None:
        tm = tm_pref
    budget = int(0.85 * vmem_cap)
    vmem_limit = max(32 << 20, int(0.88 * vmem_cap))

    M = batch * seq
    x2d = x.reshape(M, d_model)

    # Pad only to the sublane multiple (a few rows at most); the ragged last
    # token tile is handled by Pallas (OOB reads padded, OOB writes masked).
    sub = _sublane_min(x.dtype)
    m_pad = _round_up(M, sub)
    if m_pad != M:
        x2d = jnp.pad(x2d, ((0, m_pad - M), (0, 0)))

    x_item = jnp.dtype(x.dtype).itemsize
    w_item = jnp.dtype(w13t.dtype).itemsize
    out_dtype = x.dtype
    out_item = jnp.dtype(out_dtype).itemsize
    use_acc = jnp.dtype(out_dtype) != jnp.dtype(jnp.float32)

    # Token tile: sublane-aligned, clamped to the token count, shrunk until
    # blocks + accumulator + intermediates fit the generation-aware budget.
    tm = max(sub, _round_up(min(int(tm), m_pad), sub))
    while (tm > sub and
           _vmem_estimate(tm, tk_ff, d_model, x_item, w_item, out_item,
                          use_acc) > budget):
        tm = max(sub, _round_up(tm // 2, sub))

    grid = (pl.cdiv(m_pad, tm), d_ff_pad // tk_ff)
    n_tok_tiles = grid[0]

    cost = pl.CostEstimate(
        flops=6 * M * d_model * d_ff_pad,
        transcendentals=M * d_ff_pad,
        # Weights are re-streamed once per token tile.
        bytes_accessed=(x2d.size * x_item
                        + n_tok_tiles * (w13t.size + w2t.size) * w_item
                        + m_pad * d_model * out_item),
    )

    in_specs = [
        pl.BlockSpec((tm, d_model), lambda i, k: (i, 0)),
        pl.BlockSpec((d_model, 2 * tk_ff), lambda i, k: (0, k)),
        pl.BlockSpec((tk_ff, d_model), lambda i, k: (k, 0)),
    ]
    out_spec = pl.BlockSpec((tm, d_model), lambda i, k: (i, 0))

    if use_acc:
        kernel = _swiglu_kernel_acc
        scratch = [pltpu.VMEM((tm, d_model), jnp.float32)]
    else:
        kernel = _swiglu_kernel_inplace
        scratch = []

    out2d = pl.pallas_call(
        kernel,
        out_shape=jax.ShapeDtypeStruct((m_pad, d_model), out_dtype),
        grid_spec=pltpu.PrefetchScalarGridSpec(
            num_scalar_prefetch=0,
            grid=grid,
            in_specs=in_specs,
            out_specs=out_spec,
            scratch_shapes=scratch,
        ),
        compiler_params=pltpu.CompilerParams(
            dimension_semantics=("parallel", "arbitrary"),
            vmem_limit_bytes=vmem_limit,
        ),
        cost_estimate=cost,
    )(x2d, w13t, w2t)

    return out2d[:M].reshape(batch, seq, d_model)


def pack_swiglu_weights(w1, w2, w3, *, tk_ff, dtype=jnp.bfloat16):
    """One-time weight prep (hoisted out of the per-call hot path).

    w1, w3: (d_ff, d_model); w2: (d_model, d_ff)  -- PyTorch nn.Linear layout.
    d_ff is zero-padded to a multiple of tk_ff (padded rows/cols contribute
    exactly zero).  Returns (w13t, w2t) where w13t is (d_model, 2*d_ff_pad)
    with W1^T / W3^T columns interleaved per tk_ff block so a single
    rectangular BlockSpec block fetches the matching slabs of both projections.
    """
    d_ff, d_model = w1.shape
    assert w3.shape == (d_ff, d_model) and w2.shape == (d_model, d_ff)
    assert tk_ff % 128 == 0
    d_ff_pad = _round_up(d_ff, tk_ff)
    pad = d_ff_pad - d_ff
    nk = d_ff_pad // tk_ff
    if dtype is None:
        dtype = jnp.bfloat16

    w1t = jnp.pad(w1, ((0, pad), (0, 0))).T.astype(dtype)    # (d_model, d_ff_pad)
    w3t = jnp.pad(w3, ((0, pad), (0, 0))).T.astype(dtype)
    w2t = jnp.pad(w2, ((0, 0), (0, pad))).T.astype(dtype)    # (d_ff_pad, d_model)
    w13 = jnp.stack(
        [w1t.reshape(d_model, nk, tk_ff), w3t.reshape(d_model, nk, tk_ff)],
        axis=2)                                              # (d_model, nk, 2, tk_ff)
    w13t = w13.reshape(d_model, 2 * d_ff_pad)
    return w13t, w2t


def make_swiglu(w1, w2, w3, *, dtype=jnp.bfloat16, tm=None, tk_ff=None):
    """Bind weights once; returns forward(x) with packed weights closed over.

    Weights default to bf16 (dominant HBM stream; MXU-native, f32 accumulation
    kept in-kernel).  Pass dtype=jnp.float32 explicitly for full precision.
    """
    d_ff, _ = w1.shape
    _, tk_pref, _ = _tpu_defaults()
    if tk_ff is None:
        tk_ff = tk_pref
    tk_ff = _choose_tk_ff(d_ff, tk_ff)
    w13t, w2t = pack_swiglu_weights(w1, w2, w3, tk_ff=tk_ff, dtype=dtype)
    return functools.partial(swiglu_forward, w13t=w13t, w2t=w2t,
                             tk_ff=tk_ff, tm=tm)


def swiglu_reference(x, w1, w2, w3):
    hi = jax.lax.Precision.HIGHEST
    h1 = jnp.einsum("bsd,fd->bsf", x, w1, precision=hi)
    h3 = jnp.einsum("bsd,fd->bsf", x, w3, precision=hi)
    g = h1 * jax.nn.sigmoid(h1) * h3
    return jnp.einsum("bsf,df->bsd", g, w2, precision=hi)


if __name__ == "__main__":
    # --- Small shapes consistent with the module (f32, tight check) ---------
    batch, seq, d_model, d_ff = 2, 8, 32, 64
    key = jax.random.PRNGKey(0)
    kx, k1, k2, k3 = jax.random.split(key, 4)

    x = jax.random.normal(kx, (batch, seq, d_model), dtype=jnp.float32)
    # PyTorch nn.Linear convention: weight shape (out_features, in_features)
    w1 = jax.random.normal(k1, (d_ff, d_model), dtype=jnp.float32) * 0.05
    w2 = jax.random.normal(k2, (d_model, d_ff), dtype=jnp.float32) * 0.05
    w3 = jax.random.normal(k3, (d_ff, d_model), dtype=jnp.float32) * 0.05

    fwd = make_swiglu(w1, w2, w3, dtype=jnp.float32)          # f32 path
    out = fwd(x)
    jax.block_until_ready(out)
    ref = swiglu_reference(x, w1, w2, w3)
    assert out.shape == (batch, seq, d_model)
    assert jnp.allclose(out, ref, atol=1e-4, rtol=1e-4), "f32 small mismatch"

    # --- Ragged M + multi-step grid: exercises the ragged last token tile,
    #     the tiled d_ff reduction and in-place f32 accumulation -------------
    b2, s2, dm2, df2 = 2, 100, 256, 512
    kx2, ka, kb, kc = jax.random.split(jax.random.PRNGKey(1), 4)
    x2 = jax.random.normal(kx2, (b2, s2, dm2), dtype=jnp.float32)
    w1b = jax.random.normal(ka, (df2, dm2), dtype=jnp.float32) * 0.03
    w2b = jax.random.normal(kb, (dm2, df2), dtype=jnp.float32) * 0.03
    w3b = jax.random.normal(kc, (df2, dm2), dtype=jnp.float32) * 0.03

    fwd2 = make_swiglu(w1b, w2b, w3b, dtype=jnp.float32, tm=128, tk_ff=256)
    out2 = fwd2(x2)
    jax.block_until_ready(out2)
    ref2 = swiglu_reference(x2, w1b, w2b, w3b)
    assert jnp.allclose(out2, ref2, atol=5e-3, rtol=5e-3), "f32 tiled mismatch"

    # --- bf16 weights + activations (MXU-native), f32 accumulator scratch ---
    fwd_bf16 = make_swiglu(w1b, w2b, w3b, tm=128, tk_ff=256)  # default bf16
    out_bf16 = fwd_bf16(x2.astype(jnp.bfloat16)).astype(jnp.float32)
    jax.block_until_ready(out_bf16)
    assert jnp.allclose(out_bf16, ref2, atol=5e-2, rtol=5e-2), "bf16 mismatch"

    print("KERNEL_OK")
</pallas_src>

<mosaic_0001>
module attributes {stable_mosaic.version = 11 : i64} {
  func.func @_swiglu_kernel_inplace(%arg0: i32, %arg1: i32, %arg2: memref<16x32xf32, #tpu.memory_space<vmem>>, %arg3: memref<32x256xf32, #tpu.memory_space<vmem>>, %arg4: memref<128x32xf32, #tpu.memory_space<vmem>>, %arg5: memref<16x32xf32, #tpu.memory_space<vmem>>) attributes {dimension_semantics = [#tpu.dimension_semantics<parallel>, #tpu.dimension_semantics<arbitrary>], iteration_bounds = array<i64: 1, 1>, scalar_prefetch = 0 : i64, scratch_operands = 0 : i64, tpu.core_type = #tpu.core_type<tc>, window_params = [{transform_indices = @transform_0, window_bounds = array<i64: 16, 32>}, {transform_indices = @transform_1, window_bounds = array<i64: 32, 256>}, {transform_indices = @transform_2, window_bounds = array<i64: 128, 32>}, {transform_indices = @transform_3, window_bounds = array<i64: 16, 32>}]} {
    %c0_i32 = arith.constant 0 : i32
    %0 = arith.cmpi eq, %arg1, %c0_i32 : i32
    %1 = arith.extui %0 : i1 to i32
    %c0_i32_0 = arith.constant 0 : i32
    %2 = arith.cmpi ne, %1, %c0_i32_0 : i32
    scf.if %2 {
      %cst_12 = arith.constant 0.000000e+00 : f32
      %20 = vector.broadcast %cst_12 : f32 to vector<16x32xf32>
      %c0_13 = arith.constant 0 : index
      %c0_14 = arith.constant 0 : index
      %21 = vector.load %arg5[%c0_13, %c0_14] : memref<16x32xf32, #tpu.memory_space<vmem>>, vector<16x32xf32>
      tpu.vector_store %arg5[%c0_13, %c0_14], %20 {strides = array<i32>} : memref<16x32xf32, #tpu.memory_space<vmem>>, vector<16x32xf32>,
    } else {
    }
    %c0 = arith.constant 0 : index
    %c0_1 = arith.constant 0 : index
    %3 = vector.load %arg2[%c0, %c0_1] : memref<16x32xf32, #tpu.memory_space<vmem>>, vector<16x32xf32>
    %c0_2 = arith.constant 0 : index
    %c0_3 = arith.constant 0 : index
    %4 = vector.load %arg3[%c0_2, %c0_3] : memref<32x256xf32, #tpu.memory_space<vmem>>, vector<32x256xf32>
    %cst = arith.constant dense<0.000000e+00> : vector<16x256xf32>
    %5 = tpu.matmul %3, %4, %cst {dimension_numbers = #tpu.dot_dimension_numbers<[1], [0], [0], [1], [0, 0, 1, 1], [], []>} : vector<16x32xf32>, vector<32x256xf32>, vector<16x256xf32> -> vector<16x256xf32>
    %6 = vector.extract_strided_slice %5 {offsets = [0, 0], sizes = [16, 128], strides = [1, 1]} : vector<16x256xf32> to vector<16x128xf32>
    %7 = vector.extract_strided_slice %5 {offsets = [0, 128], sizes = [16, 128], strides = [1, 1]} : vector<16x256xf32> to vector<16x128xf32>
    %8 = arith.negf %6 : vector<16x128xf32>
    %9 = math.exp %8 : vector<16x128xf32>
    %cst_4 = arith.constant 1.000000e+00 : f32
    %10 = vector.broadcast %cst_4 : f32 to vector<16x128xf32>
    %11 = arith.addf %10, %9 : vector<16x128xf32>
    %12 = arith.divf %10, %11 : vector<16x128xf32>
    %13 = arith.mulf %6, %12 : vector<16x128xf32>
    %14 = arith.mulf %13, %7 : vector<16x128xf32>
    %c0_5 = arith.constant 0 : index
    %c0_6 = arith.constant 0 : index
    %15 = vector.load %arg5[%c0_5, %c0_6] : memref<16x32xf32, #tpu.memory_space<vmem>>, vector<16x32xf32>
    %c0_7 = arith.constant 0 : index
    %c0_8 = arith.constant 0 : index
    %16 = vector.load %arg4[%c0_7, %c0_8] : memref<128x32xf32, #tpu.memory_space<vmem>>, vector<128x32xf32>
    %cst_9 = arith.constant dense<0.000000e+00> : vector<16x32xf32>
    %17 = tpu.matmul %14, %16, %cst_9 {dimension_numbers = #tpu.dot_dimension_numbers<[1], [0], [0], [1], [0, 0, 1, 1], [], []>} : vector<16x128xf32>, vector<128x32xf32>, vector<16x32xf32> -> vector<16x32xf32>
    %18 = arith.addf %15, %17 : vector<16x32xf32>
    %c0_10 = arith.constant 0 : index
    %c0_11 = arith.constant 0 : index
    %19 = vector.load %arg5[%c0_10, %c0_11] : memref<16x32xf32, #tpu.memory_space<vmem>>, vector<16x32xf32>
    tpu.vector_store %arg5[%c0_10, %c0_11], %18 {strides = array<i32>} : memref<16x32xf32, #tpu.memory_space<vmem>>, vector<16x32xf32>,
    return
  }
  func.func @transform_0(%arg0: i32, %arg1: i32) -> (i32, i32) {
    %c0_i32 = arith.constant 0 : i32
    %c0_i32_0 = arith.constant 0 : i32
    return %arg0, %c0_i32 : i32, i32
  }
  func.func @transform_1(%arg0: i32, %arg1: i32) -> (i32, i32) {
    %c0_i32 = arith.constant 0 : i32
    %c0_i32_0 = arith.constant 0 : i32
    return %c0_i32, %arg1 : i32, i32
  }
  func.func @transform_2(%arg0: i32, %arg1: i32) -> (i32, i32) {
    %c0_i32 = arith.constant 0 : i32
    %c0_i32_0 = arith.constant 0 : i32
    return %arg1, %c0_i32 : i32, i32
  }
  func.func @transform_3(%arg0: i32, %arg1: i32) -> (i32, i32) {
    %c0_i32 = arith.constant 0 : i32
    %c0_i32_0 = arith.constant 0 : i32
    return %arg0, %c0_i32 : i32, i32
  }
}

</mosaic_0001>

<llo_original>
// kernel: tpu_custom_call.1
$region0: #{tpu_custom_call.1}
  #allocation0 [shape = 'u32[]', space=smem, size = 0x4, offset = 0x4, fixed_abs, tag = 'smem constant byte address 0x4 - core index']
  #allocation1 [shape = 'u32[144,128]{1,0:T(1,128)}', space=vmem, size = 0x12000, scoped, tag = 'internal scratch']
  %s0 = inlined_call_operand.hbm [shape: f32[16,32], index: 0, kind: input, shape index: {}]
  %s1 = inlined_call_operand.hbm [shape: f32[32,256], index: 1, kind: input, shape index: {}]
  %s2 = inlined_call_operand.hbm [shape: f32[128,32], index: 2, kind: input, shape index: {}]
  %s3 = inlined_call_operand.hbm [shape: f32[16,32], index: 3, kind: output, shape index: {}]
  %s4 = sld [smem:[#allocation0]]
  $region38: #{tpu_custom_call.1} parent=0
    _
  %s6 = ssub.s32 1, %s4
  %s7 = scalar_select 0, %s6, %s4
  $region1: #{tpu_custom_call.1} parent=0
    #allocation2 [shape = 'u8[8192]{0}', space=vmem, size = 0x2000, scoped, tag = 'input window, operand 0, single buffered']
    #allocation3 [shape = 's32[1]{0}', space=sflag, size = 0x4, scoped, tag = 'scoped memory for tpu_custom_call.1']
    #allocation4 [shape = 's32[1]{0}', space=sflag, size = 0x4, scoped, tag = 'scoped memory for tpu_custom_call.1']
    #allocation5 [shape = 'u8[32768]{0}', space=vmem, size = 0x8000, scoped, tag = 'input window, operand 1, single buffered']
    #allocation6 [shape = 's32[1]{0}', space=sflag, size = 0x4, scoped, tag = 'scoped memory for tpu_custom_call.1']
    #allocation7 [shape = 'u8[65536]{0}', space=vmem, size = 0x10000, scoped, tag = 'input window, operand 2, single buffered']
    #allocation8 [shape = 'u8[8192]{0}', space=vmem, size = 0x2000, scoped, tag = 'output window, operand 0, single buffered']
    %8 = vsyncpa [#allocation3], 0
    %9 = vsyncpa [#allocation6], 0
    %10 = vsyncpa [#allocation4], 0
    // Predicated region
    $region2: #{tpu_custom_call.1} parent=1 // pred_check
      _
    $region3: #{tpu_custom_call.1} parent=1 // pred_check_branch
      %12 = sbr.rel (0) target = $region5
    $region4: #{tpu_custom_call.1} parent=1 // pred_region
      %s14 = ssub.s32 256, 256
      %15 = vsyncadd [#allocation3], %s14
      %s16 = sshll.u32 [#allocation2], 4
      %s17 = int_to_ptr.vmem [resolvable:$true] %s16
      %22 = dma.hbm_to_vmem [thread:$0]  %s0, 256, %s17, [#allocation3], 128, 128, 8
    $region5: #{tpu_custom_call.1} parent=1 // pred_fallthru
      _
    // Predicated region
    $region6: #{tpu_custom_call.1} parent=1 // pred_check
      _
    $region7: #{tpu_custom_call.1} parent=1 // pred_check_branch
      %24 = sbr.rel (0) target = $region9
    $region8: #{tpu_custom_call.1} parent=1 // pred_region
      %s26 = ssub.s32 1024, 1024
      %27 = vsyncadd [#allocation6], %s26
      %s28 = sshll.u32 [#allocation5], 4
      %s29 = int_to_ptr.vmem [resolvable:$true] %s28
      %34 = dma.hbm_to_vmem [thread:$0]  %s1, 1024, %s29, [#allocation6], 256, 256, 16
    $region9: #{tpu_custom_call.1} parent=1 // pred_fallthru
      _
    // Predicated region
    $region10: #{tpu_custom_call.1} parent=1 // pred_check
      _
    $region11: #{tpu_custom_call.1} parent=1 // pred_check_branch
      %36 = sbr.rel (0) target = $region13
    $region12: #{tpu_custom_call.1} parent=1 // pred_region
      %s38 = ssub.s32 2048, 2048
      %39 = vsyncadd [#allocation6], %s38
      %s40 = sshll.u32 [#allocation7], 4
      %s41 = int_to_ptr.vmem [resolvable:$true] %s40
      %46 = dma.hbm_to_vmem [thread:$0]  %s2, 2048, %s41, [#allocation6], 128, 128, 8
    $region13: #{tpu_custom_call.1} parent=1 // pred_fallthru
      _
    // Predicated region
    $region14: #{tpu_custom_call.1} parent=1 // pred_check
      _
    $region15: #{tpu_custom_call.1} parent=1 // pred_check_branch
      %48 = sbr.rel (0) target = $region17
    $region16: #{tpu_custom_call.1} parent=1 // pred_region
      %49 = dma.done [#allocation3], 256
    $region17: #{tpu_custom_call.1} parent=1 // pred_fallthru
      _
    // Predicated region
    $region18: #{tpu_custom_call.1} parent=1 // pred_check
      _
    $region19: #{tpu_custom_call.1} parent=1 // pred_check_branch
      %51 = sbr.rel (0) target = $region21
    $region20: #{tpu_custom_call.1} parent=1 // pred_region
      %52 = dma.done [#allocation6], 1024
    $region21: #{tpu_custom_call.1} parent=1 // pred_fallthru
      _
    // Predicated region
    $region22: #{tpu_custom_call.1} parent=1 // pred_check
      _
    $region23: #{tpu_custom_call.1} parent=1 // pred_check_branch
      %54 = sbr.rel (0) target = $region25
    $region24: #{tpu_custom_call.1} parent=1 // pred_region
      %55 = dma.done [#allocation6], 2048
    $region25: #{tpu_custom_call.1} parent=1 // pred_fallthru
      _
    %p56 = scmp.eq.s32.totalorder 0, 0
    // Predicated region
    $region26: #{tpu_custom_call.1} parent=1 // pred_check
      %p57 = pneg %p56
    $region27: #{tpu_custom_call.1} parent=1 // pred_check_branch
      %59 = sbr.rel (%p57) target = $region29
    $region28: #{tpu_custom_call.1} parent=1 // pred_region
      %vm60 = vcmask 261120
      %61 = vst.msk [vmem:[#allocation8] sm:$0xff] %vm60, 0.0
      %62 = vst.msk [vmem:[#allocation8 + $0x8] sm:$0xff] %vm60, 0.0
    $region29: #{tpu_custom_call.1} parent=1 // pred_fallthru
      _
    %v63 = vld [vmem:[#allocation2] sm:$0xff]
    %v64 = vld [vmem:[#allocation2 + $0x8] sm:$0xff]
    %v65 = vld [vmem:[#allocation5] sm:$0xff]
    %v66 = vld [vmem:[#allocation5 + $0x8] sm:$0xff]
    %v67 = vld [vmem:[#allocation5 + $0x10] sm:$0xff]
    %v68 = vld [vmem:[#allocation5 + $0x18] sm:$0xff]
    %v69 = vld [vmem:[#allocation5 + $0x20] sm:$0xff]
    %v70 = vld [vmem:[#allocation5 + $0x28] sm:$0xff]
    %v71 = vld [vmem:[#allocation5 + $0x30] sm:$0xff]
    %v72 = vld [vmem:[#allocation5 + $0x38] sm:$0xff]
    %vm73 = vcmask 261120
    %v75 = vsel %vm73, %v63, 0
    %v78 = vsel %vm73, %v64, 0
    %80 = vmatprep.subr.mxu0 %v66
    %81 = vmatpush1.msra.mxu0 %v65
    %82 = vmatprep.subr.mxu0 %v68
    %83 = vmatpush1.msra.mxu0 %v67
    %84 = vmatprep.subr.mxu0 %v70
    %85 = vmatpush1.msra.mxu0 %v69
    %86 = vmatprep.subr.mxu0 %v72
    %87 = vmatpush1.msra.mxu0 %v71
    %88 = vmatprep.subr.mxu0 0.0
    %89 = vmatpush1.msra.mxu0 0.0
    %90 = vmatprep.subr.mxu0 0.0
    %91 = vmatpush1.msra.mxu0 0.0
    %92 = vmatprep.subr.mxu0 0.0
    %93 = vmatpush1.msra.mxu0 0.0
    %94 = vmatprep.subr.mxu0 0.0
    %95 = vmatpush1.msra.mxu0 0.0
    %96 = vmatprep.subr.mxu0 0.0
    %97 = vmatpush1.msra.mxu0 0.0
    %98 = vmatprep.subr.mxu0 0.0
    %99 = vmatpush1.msra.mxu0 0.0
    %100 = vmatprep.subr.mxu0 0.0
    %101 = vmatpush1.msra.mxu0 0.0
    %102 = vmatprep.subr.mxu0 0.0
    %103 = vmatpush1.msra.mxu0 0.0
    %104 = vmatprep.subr.mxu0 0.0
    %105 = vmatpush1.msra.mxu0 0.0
    %106 = vmatprep.subr.mxu0 0.0
    %107 = vmatpush1.msra.mxu0 0.0
    %108 = vmatprep.subr.mxu0 0.0
    %109 = vmatpush1.msra.mxu0 0.0
    %110 = vmatprep.subr.mxu0 0.0
    %111 = vmatpush1.msra.mxu0 0.0
    %112 = vmatprep.subr.mxu0 0.0
    %113 = vmatpush1.msra.mxu0 0.0
    %114 = vmatprep.subr.mxu0 0.0
    %115 = vmatpush1.msra.mxu0 0.0
    %116 = vmatprep.subr.mxu0 0.0
    %117 = vmatpush1.msra.mxu0 0.0
    %118 = vmatprep.subr.mxu0 0.0
    %119 = vmatpush1.msra.mxu0 0.0
    %120 = vmatprep.subr.mxu0 0.0
    %121 = vmatpush1.msra.mxu0 0.0
    %122 = vmatprep.subr.mxu0 0.0
    %123 = vmatpush1.msra.mxu0 0.0
    %124 = vmatprep.subr.mxu0 0.0
    %125 = vmatpush1.msra.mxu0 0.0
    %126 = vmatprep.subr.mxu0 0.0
    %127 = vmatpush1.msra.mxu0 0.0
    %128 = vmatprep.subr.mxu0 0.0
    %129 = vmatpush1.msra.mxu0 0.0
    %130 = vmatprep.subr.mxu0 0.0
    %131 = vmatpush1.msra.mxu0 0.0
    %132 = vmatprep.subr.mxu0 0.0
    %133 = vmatpush1.msra.mxu0 0.0
    %134 = vmatprep.subr.mxu0 0.0
    %135 = vmatpush1.msra.mxu0 0.0
    %136 = vmatprep.subr.mxu0 0.0
    %137 = vmatpush1.msra.mxu0 0.0
    %138 = vmatprep.subr.mxu0 0.0
    %139 = vmatpush1.msra.mxu0 0.0
    %140 = vmatprep.subr.mxu0 0.0
    %141 = vmatpush1.msra.mxu0 0.0
    %142 = vmatprep.subr.mxu0 0.0
    %143 = vmatpush1.msra.mxu0 0.0
    %144 = vmatprep.mubr.f32.mxu0 0.0
    %145 = vmatmul.mubr.f32.gmra.mrb[0].mxu0 %v75
    %v146 = vpop.f32.mrb[0].mxu0
    %v147 = vadd.f32 0.0, %v146
    %v148 = vpop.f32.mrb[0].mxu0
    %v149 = vadd.f32 0.0, %v148
    %150 = vmatprep.mubr.f32.mxu0 0.0
    %151 = vmatmul.mubr.f32.gmra.mrb[0].mxu0 %v78
    %v152 = vpop.f32.mrb[0].mxu0
    %v153 = vadd.f32 0.0, %v152
    %v154 = vpop.f32.mrb[0].mxu0
    %v155 = vadd.f32 0.0, %v154
    %156 = vdwg.mxu0
    %v157 = vxor.u32 %v147, 2147483648
    %v158 = vxor.u32 %v153, 2147483648
    %v159 = vmul.f32 %v157, 1.442695
    %v160 = vpow.pop %v159
    %v161 = vmul.f32 %v158, 1.442695
    %v162 = vpow.pop %v161
    %v163 = vadd.f32 %v160, 1.0
    %v164 = vadd.f32 %v162, 1.0
    %v165 = vrcp.pop %v163
    %v166 = vmul.f32 1.0, %v165
    %v167 = vrcp.pop %v164
    %v168 = vmul.f32 1.0, %v167
    %v169 = vmul.f32 %v147, %v166
    %v170 = vmul.f32 %v153, %v168
    %v171 = vmul.f32 %v169, %v149
    %v172 = vmul.f32 %v170, %v155
    %v173 = vld [vmem:[#allocation8] sm:$0xff]
    %v174 = vld [vmem:[#allocation8 + $0x8] sm:$0xff]
    %v175 = vld [vmem:[#allocation7] sm:$0xff]
    %v176 = vld [vmem:[#allocation7 + $0x8] sm:$0xff]
    %v177 = vld [vmem:[#allocation7 + $0x10] sm:$0xff]
    %v178 = vld [vmem:[#allocation7 + $0x18] sm:$0xff]
    %v179 = vld [vmem:[#allocation7 + $0x20] sm:$0xff]
    %v180 = vld [vmem:[#allocation7 + $0x28] sm:$0xff]
    %v181 = vld [vmem:[#allocation7 + $0x30] sm:$0xff]
    %v182 = vld [vmem:[#allocation7 + $0x38] sm:$0xff]
    %v183 = vld [vmem:[#allocation7 + $0x40] sm:$0xff]
    %v184 = vld [vmem:[#allocation7 + $0x48] sm:$0xff]
    %v185 = vld [vmem:[#allocation7 + $0x50] sm:$0xff]
    %v186 = vld [vmem:[#allocation7 + $0x58] sm:$0xff]
    %v187 = vld [vmem:[#allocation7 + $0x60] sm:$0xff]
    %v188 = vld [vmem:[#allocation7 + $0x68] sm:$0xff]
    %v189 = vld [vmem:[#allocation7 + $0x70] sm:$0xff]
    %v190 = vld [vmem:[#allocation7 + $0x78] sm:$0xff]
    %191 = vmatprep.subr.mxu0 0.0
    %192 = vmatpush1.msra.mxu0 %v175
    %193 = vmatprep.subr.mxu0 0.0
    %194 = vmatpush1.msra.mxu0 %v176
    %195 = vmatprep.subr.mxu0 0.0
    %196 = vmatpush1.msra.mxu0 %v177
    %197 = vmatprep.subr.mxu0 0.0
    %198 = vmatpush1.msra.mxu0 %v178
    %199 = vmatprep.subr.mxu0 0.0
    %200 = vmatpush1.msra.mxu0 %v179
    %201 = vmatprep.subr.mxu0 0.0
    %202 = vmatpush1.msra.mxu0 %v180
    %203 = vmatprep.subr.mxu0 0.0
    %204 = vmatpush1.msra.mxu0 %v181
    %205 = vmatprep.subr.mxu0 0.0
    %206 = vmatpush1.msra.mxu0 %v182
    %207 = vmatprep.subr.mxu0 0.0
    %208 = vmatpush1.msra.mxu0 %v183
    %209 = vmatprep.subr.mxu0 0.0
    %210 = vmatpush1.msra.mxu0 %v184
    %211 = vmatprep.subr.mxu0 0.0
    %212 = vmatpush1.msra.mxu0 %v185
    %213 = vmatprep.subr.mxu0 0.0
    %214 = vmatpush1.msra.mxu0 %v186
    %215 = vmatprep.subr.mxu0 0.0
    %216 = vmatpush1.msra.mxu0 %v187
    %217 = vmatprep.subr.mxu0 0.0
    %218 = vmatpush1.msra.mxu0 %v188
    %219 = vmatprep.subr.mxu0 0.0
    %220 = vmatpush1.msra.mxu0 %v189
    %221 = vmatprep.subr.mxu0 0.0
    %222 = vmatpush1.msra.mxu0 %v190
    %223 = vmatprep.subr.mxu0 0.0
    %224 = vmatpush1.msra.mxu0 0.0
    %225 = vmatprep.subr.mxu0 0.0
    %226 = vmatpush1.msra.mxu0 0.0
    %227 = vmatprep.subr.mxu0 0.0
    %228 = vmatpush1.msra.mxu0 0.0
    %229 = vmatprep.subr.mxu0 0.0
    %230 = vmatpush1.msra.mxu0 0.0
    %231 = vmatprep.subr.mxu0 0.0
    %232 = vmatpush1.msra.mxu0 0.0
    %233 = vmatprep.subr.mxu0 0.0
    %234 = vmatpush1.msra.mxu0 0.0
    %235 = vmatprep.subr.mxu0 0.0
    %236 = vmatpush1.msra.mxu0 0.0
    %237 = vmatprep.subr.mxu0 0.0
    %238 = vmatpush1.msra.mxu0 0.0
    %239 = vmatprep.subr.mxu0 0.0
    %240 = vmatpush1.msra.mxu0 0.0
    %241 = vmatprep.subr.mxu0 0.0
    %242 = vmatpush1.msra.mxu0 0.0
    %243 = vmatprep.subr.mxu0 0.0
    %244 = vmatpush1.msra.mxu0 0.0
    %245 = vmatprep.subr.mxu0 0.0
    %246 = vmatpush1.msra.mxu0 0.0
    %247 = vmatprep.subr.mxu0 0.0
    %248 = vmatpush1.msra.mxu0 0.0
    %249 = vmatprep.subr.mxu0 0.0
    %250 = vmatpush1.msra.mxu0 0.0
    %251 = vmatprep.subr.mxu0 0.0
    %252 = vmatpush1.msra.mxu0 0.0
    %253 = vmatprep.subr.mxu0 0.0
    %254 = vmatpush1.msra.mxu0 0.0
    %255 = vmatprep.mubr.f32.mxu0 0.0
    %256 = vmatmul.mubr.f32.gmra.mrb[0].mxu0 %v171
    %v257 = vpop.f32.mrb[0].mxu0
    %v258 = vadd.f32 0.0, %v257
    %v259 = vpop.f32.mrb[0].mxu0
    %260 = vmatprep.mubr.f32.mxu0 0.0
    %261 = vmatmul.mubr.f32.gmra.mrb[0].mxu0 %v172
    %v262 = vpop.f32.mrb[0].mxu0
    %v263 = vadd.f32 0.0, %v262
    %v264 = vpop.f32.mrb[0].mxu0
    %265 = vdwg.mxu0
    %v266 = vadd.f32 %v173, %v258
    %v267 = vadd.f32 %v174, %v263
    %268 = vst.msk [vmem:[#allocation8] sm:$0xff] %vm73, %v266
    %269 = vst.msk [vmem:[#allocation8 + $0x8] sm:$0xff] %vm73, %v267
    // Predicated region
    $region30: #{tpu_custom_call.1} parent=1 // pred_check
      _
    $region31: #{tpu_custom_call.1} parent=1 // pred_check_branch
      %271 = sbr.rel (0) target = $region33
    $region32: #{tpu_custom_call.1} parent=1 // pred_region
      %s273 = ssub.s32 256, 256
      %274 = vsyncadd [#allocation4], %s273
      %s275 = sshll.u32 [#allocation8], 4
      %s276 = int_to_ptr.vmem [resolvable:$true] %s275
      %281 = dma.vmem_to_hbm [thread:$0]  %s276, 256, %s3, [#allocation4], 128, 128, 8
    $region33: #{tpu_custom_call.1} parent=1 // pred_fallthru
      _
    // Predicated region
    $region34: #{tpu_custom_call.1} parent=1 // pred_check
      _
    $region35: #{tpu_custom_call.1} parent=1 // pred_check_branch
      %283 = sbr.rel (0) target = $region37
    $region36: #{tpu_custom_call.1} parent=1 // pred_region
      %284 = dma.done [#allocation4], 256
    $region37: #{tpu_custom_call.1} parent=1 // pred_fallthru
      _
    %285 = vsyncpa [#allocation3], 1
    %286 = vsyncpa [#allocation6], 1
    %287 = vsyncpa [#allocation4], 1

</llo_original>
